<compile_context>
chip_gen: v6e
topology: v6e:2x2x1
jax: 0.10.0
libtpu: 0.0.40
codegen_flags: <defaults>
</compile_context>

<pallas_src>
import functools
import math

import jax
import jax.numpy as jnp
from jax.experimental import pallas as pl
from jax.experimental.pallas import tpu as pltpu


# --------------------------- kernel body ------------------------------------
def _linear_block_kernel(x_ref, w_ref, b_ref, o_ref, acc_ref, *,
                         activation, mxu_dtype):
    """One (tm, tn) output tile; grid axis 2 walks the K reduction."""
    k = pl.program_id(2)

    xa = x_ref[...]
    wa = w_ref[...]
    if mxu_dtype is not None:
        xa = xa.astype(mxu_dtype)
        wa = wa.astype(mxu_dtype)

    # (tm, tk) x (tn, tk) contracted on trailing dims -> (tm, tn), f32 acc.
    part = jax.lax.dot_general(
        xa, wa,
        dimension_numbers=(((1,), (1,)), ((), ())),
        preferred_element_type=jnp.float32)

    @pl.when(k == 0)
    def _first():
        acc_ref[...] = part

    @pl.when(k > 0)
    def _rest():
        acc_ref[...] += part

    @pl.when(k == pl.num_programs(2) - 1)
    def _finalize():
        y = acc_ref[...] + b_ref[...].astype(jnp.float32)     # (1, tn) bcast
        if activation == 'relu':
            y = jnp.maximum(y, 0.0)
        elif activation == 'lrelu':
            y = jnp.where(y >= 0.0, y, 0.2 * y)
        elif activation == 'tanh':
            y = jnp.tanh(y)
        elif activation == 'sigmoid':
            y = jax.nn.sigmoid(y)
        elif activation == 'selu':
            alpha = 1.6732632423543772
            scale = 1.0507009873554805
            y = scale * jnp.where(y >= 0.0, y, alpha * (jnp.exp(y) - 1.0))
        elif activation == 'none':
            pass
        else:
            # TODO(synk): 'prelu' needs the learned per-channel slope param.
            raise NotImplementedError(f"activation={activation}")
        o_ref[...] = y.astype(o_ref.dtype)


# ------------------------------ tiling --------------------------------------
def _round_up(x, m):
    return ((x + m - 1) // m) * m


def _default_tiles():
    """(tm, tn, tk, vmem_limit_bytes) tuned per TPU generation."""
    try:
        kind = jax.devices()[0].device_kind.lower()
    except Exception:
        kind = ""
    if "v5e" in kind or "v5 lite" in kind or "v5litepod" in kind:
        return 512, 512, 256, 64 << 20          # AI=256 > ~240 crossover
    if "v6" in kind:                             # Trillium / v6e
        return 1024, 1024, 256, 100 << 20        # AI=512; raise scoped VMEM
    if "v7" in kind:                             # v7x: only 64 MiB VMEM/TC
        return 768, 768, 256, 48 << 20           # AI=384 > ~310 crossover
    # Unknown / older generation: moderate, safe defaults.
    return 512, 512, 256, None


# ------------------------------ wrapper -------------------------------------
def linear_block_pallas(x, weight, bias, *, activation='relu', norm='none',
                        mxu_dtype=jnp.bfloat16, out_dtype=None,
                        tm=None, tn=None, tk=None, vmem_limit_bytes=None):
    """LinearBlock forward.  `weight` is PyTorch nn.Linear layout (out, in)."""
    if norm != 'none':
        # TODO(synk): 'bn'/'in'/'ln' norms and the 'sn' spectral-norm power
        # iteration are not implemented in-kernel; the default LinearBlock
        # construction uses norm='none'.
        raise NotImplementedError(f"norm={norm}")

    *lead, K = x.shape
    N, K_w = weight.shape
    assert K_w == K, f"weight K {K_w} != x K {K}"
    M = math.prod(lead) if lead else 1
    out_dtype = out_dtype or x.dtype

    d_tm, d_tn, d_tk, d_vmem = _default_tiles()
    tm = tm or d_tm
    tn = tn or d_tn
    tk = tk or d_tk
    if vmem_limit_bytes is None:
        vmem_limit_bytes = d_vmem

    # (8, 128)-aligned padded dims; tiles never exceed the padded dims.
    Mp = _round_up(M, 8)
    Np = _round_up(N, 128)
    Kp = _round_up(K, 128)
    tm_ = min(tm, Mp)
    tn_ = min(tn, Np)
    tk_ = min(tk, Kp)
    Mp = _round_up(Mp, tm_)
    Np = _round_up(Np, tn_)
    Kp = _round_up(Kp, tk_)

    # Megacore: make sure at least 2 (M, N) blocks exist so both v7x TCs work.
    if Mp // tm_ == 1 and Np // tn_ == 1:
        if tn_ % 256 == 0:
            tn_ //= 2
        elif tm_ % 16 == 0 and tm_ > 8:
            tm_ //= 2

    grid = (Mp // tm_, Np // tn_, Kp // tk_)

    # Zero-pad (exact for the GEMM; bias pad is 0, padded rows/cols sliced off).
    x2 = x.reshape(M, K)
    if (Mp, Kp) != (M, K):
        x2 = jnp.pad(x2, ((0, Mp - M), (0, Kp - K)))
    w2 = weight
    if (Np, Kp) != (N, K):
        w2 = jnp.pad(w2, ((0, Np - N), (0, Kp - K)))
    b2 = bias.reshape(1, N).astype(jnp.float32)
    if Np != N:
        b2 = jnp.pad(b2, ((0, 0), (0, Np - N)))

    itemsize = lambda a: jnp.dtype(a).itemsize
    cost = pl.CostEstimate(
        flops=2 * Mp * Np * Kp,
        transcendentals=0,
        bytes_accessed=(Mp * Kp * itemsize(x2.dtype)
                        + Np * Kp * itemsize(w2.dtype)
                        + Mp * Np * itemsize(out_dtype)),
    )

    out = pl.pallas_call(
        functools.partial(_linear_block_kernel,
                          activation=activation, mxu_dtype=mxu_dtype),
        out_shape=jax.ShapeDtypeStruct((Mp, Np), out_dtype),
        grid_spec=pltpu.PrefetchScalarGridSpec(
            num_scalar_prefetch=0,
            grid=grid,
            in_specs=[
                pl.BlockSpec((tm_, tk_), lambda i, j, k: (i, k)),   # x
                pl.BlockSpec((tn_, tk_), lambda i, j, k: (j, k)),   # W (N, K)
                pl.BlockSpec((1, tn_), lambda i, j, k: (0, j)),     # bias
            ],
            out_specs=pl.BlockSpec((tm_, tn_), lambda i, j, k: (i, j)),
            scratch_shapes=[pltpu.VMEM((tm_, tn_), jnp.float32)],
        ),
        compiler_params=pltpu.CompilerParams(
            dimension_semantics=("parallel", "parallel", "arbitrary"),
            vmem_limit_bytes=vmem_limit_bytes),
        cost_estimate=cost,
    )(x2, w2, b2)

    return out[:M, :N].reshape(*lead, N)


# ------------------------- pure-JAX reference --------------------------------
def linear_block_ref(x, weight, bias, *, activation='relu',
                     mxu_dtype=jnp.bfloat16):
    # Mirror the kernel's bf16-operand / f32-accumulation contract.
    xb = x.astype(mxu_dtype).astype(jnp.float32)
    wb = weight.astype(mxu_dtype).astype(jnp.float32)
    y = jnp.einsum('...k,nk->...n', xb, wb,
                   precision=jax.lax.Precision.HIGHEST)
    y = y + bias.astype(jnp.float32)
    if activation == 'relu':
        y = jnp.maximum(y, 0.0)
    elif activation == 'lrelu':
        y = jnp.where(y >= 0.0, y, 0.2 * y)
    elif activation == 'tanh':
        y = jnp.tanh(y)
    elif activation == 'sigmoid':
        y = jax.nn.sigmoid(y)
    elif activation == 'selu':
        alpha = 1.6732632423543772
        scale = 1.0507009873554805
        y = scale * jnp.where(y >= 0.0, y, alpha * (jnp.exp(y) - 1.0))
    elif activation == 'none':
        pass
    return y.astype(x.dtype)


if __name__ == "__main__":
    key = jax.random.PRNGKey(0)
    k_x, k_w, k_b = jax.random.split(key, 3)

    # batch=2, seq=8, input_dim=32, output_dim=32
    B, S, D_in, D_out = 2, 8, 32, 32
    x = jax.random.normal(k_x, (B, S, D_in), dtype=jnp.float32)
    weight = jax.random.normal(k_w, (D_out, D_in), dtype=jnp.float32) / jnp.sqrt(
        jnp.float32(D_in))
    bias = jax.random.normal(k_b, (D_out,), dtype=jnp.float32) * 0.1

    for act in ('relu', 'tanh'):
        out = jax.block_until_ready(
            linear_block_pallas(x, weight, bias, activation=act))
        ref = jax.block_until_ready(
            linear_block_ref(x, weight, bias, activation=act))
        assert out.shape == (B, S, D_out)
        max_err = jnp.max(jnp.abs(out - ref))
        assert jnp.allclose(out, ref, atol=2e-4, rtol=2e-4), \
            f"activation={act}: max abs err {max_err}"

    print("KERNEL_OK")
</pallas_src>

<mosaic_0001>
module attributes {stable_mosaic.version = 11 : i64} {
  func.func @_linear_block_kernel(%arg0: i32, %arg1: i32, %arg2: i32, %arg3: memref<8x128xf32, #tpu.memory_space<vmem>>, %arg4: memref<128x128xf32, #tpu.memory_space<vmem>>, %arg5: memref<1x128xf32, #tpu.memory_space<vmem>>, %arg6: memref<8x128xf32, #tpu.memory_space<vmem>>, %arg7: memref<8x128xf32, #tpu.memory_space<vmem>>) attributes {dimension_semantics = [#tpu.dimension_semantics<parallel>, #tpu.dimension_semantics<parallel>, #tpu.dimension_semantics<arbitrary>], iteration_bounds = array<i64: 2, 1, 1>, scalar_prefetch = 0 : i64, scratch_operands = 1 : i64, tpu.core_type = #tpu.core_type<tc>, window_params = [{transform_indices = @transform_0, window_bounds = array<i64: 8, 128>}, {transform_indices = @transform_1, window_bounds = array<i64: 128, 128>}, {transform_indices = @transform_2, window_bounds = array<i64: 1, 128>}, {transform_indices = @transform_3, window_bounds = array<i64: 8, 128>}]} {
    %c0 = arith.constant 0 : index
    %c0_0 = arith.constant 0 : index
    %0 = vector.load %arg3[%c0, %c0_0] : memref<8x128xf32, #tpu.memory_space<vmem>>, vector<8x128xf32>
    %c0_1 = arith.constant 0 : index
    %c0_2 = arith.constant 0 : index
    %1 = vector.load %arg4[%c0_1, %c0_2] : memref<128x128xf32, #tpu.memory_space<vmem>>, vector<128x128xf32>
    %2 = arith.truncf %0 : vector<8x128xf32> to vector<8x128xbf16>
    %3 = arith.truncf %1 : vector<128x128xf32> to vector<128x128xbf16>
    %cst = arith.constant dense<0.000000e+00> : vector<8x128xf32>
    %4 = tpu.matmul %2, %3, %cst {dimension_numbers = #tpu.dot_dimension_numbers<[1], [1], [0], [0], [0, 0, 1, 0], [], []>} : vector<8x128xbf16>, vector<128x128xbf16>, vector<8x128xf32> -> vector<8x128xf32>
    %c0_i32 = arith.constant 0 : i32
    %5 = arith.cmpi eq, %arg2, %c0_i32 : i32
    %6 = arith.extui %5 : i1 to i32
    %c0_i32_3 = arith.constant 0 : i32
    %7 = arith.cmpi ne, %6, %c0_i32_3 : i32
    scf.if %7 {
      %c0_8 = arith.constant 0 : index
      %c0_9 = arith.constant 0 : index
      %14 = vector.load %arg7[%c0_8, %c0_9] : memref<8x128xf32, #tpu.memory_space<vmem>>, vector<8x128xf32>
      tpu.vector_store %arg7[%c0_8, %c0_9], %4 {strides = array<i32>} : memref<8x128xf32, #tpu.memory_space<vmem>>, vector<8x128xf32>,
    } else {
    }
    %c0_i32_4 = arith.constant 0 : i32
    %8 = arith.cmpi sgt, %arg2, %c0_i32_4 : i32
    %9 = arith.extui %8 : i1 to i32
    %c0_i32_5 = arith.constant 0 : i32
    %10 = arith.cmpi ne, %9, %c0_i32_5 : i32
    scf.if %10 {
      %c0_8 = arith.constant 0 : index
      %c0_9 = arith.constant 0 : index
      %14 = vector.load %arg7[%c0_8, %c0_9] : memref<8x128xf32, #tpu.memory_space<vmem>>, vector<8x128xf32>
      %15 = arith.addf %14, %4 : vector<8x128xf32>
      %c0_10 = arith.constant 0 : index
      %c0_11 = arith.constant 0 : index
      %16 = vector.load %arg7[%c0_10, %c0_11] : memref<8x128xf32, #tpu.memory_space<vmem>>, vector<8x128xf32>
      tpu.vector_store %arg7[%c0_10, %c0_11], %15 {strides = array<i32>} : memref<8x128xf32, #tpu.memory_space<vmem>>, vector<8x128xf32>,
    } else {
    }
    %c0_i32_6 = arith.constant 0 : i32
    %11 = arith.cmpi eq, %arg2, %c0_i32_6 : i32
    %12 = arith.extui %11 : i1 to i32
    %c0_i32_7 = arith.constant 0 : i32
    %13 = arith.cmpi ne, %12, %c0_i32_7 : i32
    scf.if %13 {
      %c0_8 = arith.constant 0 : index
      %c0_9 = arith.constant 0 : index
      %14 = vector.load %arg7[%c0_8, %c0_9] : memref<8x128xf32, #tpu.memory_space<vmem>>, vector<8x128xf32>
      %c0_10 = arith.constant 0 : index
      %c0_11 = arith.constant 0 : index
      %15 = vector.load %arg5[%c0_10, %c0_11] : memref<1x128xf32, #tpu.memory_space<vmem>>, vector<1x128xf32>
      %16 = vector.broadcast %15 : vector<1x128xf32> to vector<8x128xf32>
      %17 = arith.addf %14, %16 : vector<8x128xf32>
      %cst_12 = arith.constant 0.000000e+00 : f32
      %18 = vector.broadcast %cst_12 : f32 to vector<8x128xf32>
      %19 = arith.maximumf %17, %18 : vector<8x128xf32>
      %c0_13 = arith.constant 0 : index
      %c0_14 = arith.constant 0 : index
      %20 = vector.load %arg6[%c0_13, %c0_14] : memref<8x128xf32, #tpu.memory_space<vmem>>, vector<8x128xf32>
      tpu.vector_store %arg6[%c0_13, %c0_14], %19 {strides = array<i32>} : memref<8x128xf32, #tpu.memory_space<vmem>>, vector<8x128xf32>,
    } else {
    }
    return
  }
  func.func @transform_0(%arg0: i32, %arg1: i32, %arg2: i32) -> (i32, i32) {
    %c0_i32 = arith.constant 0 : i32
    return %arg0, %arg2 : i32, i32
  }
  func.func @transform_1(%arg0: i32, %arg1: i32, %arg2: i32) -> (i32, i32) {
    %c0_i32 = arith.constant 0 : i32
    return %arg1, %arg2 : i32, i32
  }
  func.func @transform_2(%arg0: i32, %arg1: i32, %arg2: i32) -> (i32, i32) {
    %c0_i32 = arith.constant 0 : i32
    %c0_i32_0 = arith.constant 0 : i32
    return %c0_i32, %arg1 : i32, i32
  }
  func.func @transform_3(%arg0: i32, %arg1: i32, %arg2: i32) -> (i32, i32) {
    %c0_i32 = arith.constant 0 : i32
    return %arg0, %arg1 : i32, i32
  }
}

</mosaic_0001>

<llo_original>
// kernel: tpu_custom_call.1
$region0: #{tpu_custom_call.1}
  #allocation0 [shape = 'u32[]', space=smem, size = 0x4, offset = 0x4, fixed_abs, tag = 'smem constant byte address 0x4 - core index']
  #allocation1 [shape = 'u32[144,128]{1,0:T(1,128)}', space=vmem, size = 0x12000, scoped, tag = 'internal scratch']
  #allocation2 [shape = 'f32[8,128]{1,0:T(8,128)}', space=vmem, size = 0x1000, scoped, tag = 'scratch operand']
  %s0 = inlined_call_operand.hbm [shape: f32[16,128], index: 0, kind: input, shape index: {}]
  %s1 = inlined_call_operand.hbm [shape: f32[128,128], index: 1, kind: input, shape index: {}]
  %s2 = inlined_call_operand.vmem [shape: f32[1,128], index: 2, kind: input, shape index: {}]
  %s3 = inlined_call_operand.hbm [shape: f32[16,128], index: 3, kind: output, shape index: {}]
  %s4 = sld [smem:[#allocation0]]
  $region65: #{tpu_custom_call.1} parent=0
    _
  %s6 = ssub.s32 1, %s4
  %s7 = scalar_select 0, %s6, %s4
  $region1: #{tpu_custom_call.1} parent=0
    #allocation3 [shape = 'u8[8192]{0}', space=vmem, size = 0x2000, scoped, tag = 'input window, operand 0']
    #allocation4 [shape = 's32[2]{0}', space=sflag, size = 0x8, scoped, tag = 'scoped memory for tpu_custom_call.1']
    #allocation5 [shape = 's32[2]{0}', space=sflag, size = 0x8, scoped, tag = 'scoped memory for tpu_custom_call.1']
    #allocation6 [shape = 'u8[65536]{0}', space=vmem, size = 0x10000, scoped, tag = 'input window, operand 1, single buffered']
    #allocation7 [shape = 's32[1]{0}', space=sflag, size = 0x4, scoped, tag = 'scoped memory for tpu_custom_call.1']
    #allocation8 [shape = 'u8[8192]{0}', space=vmem, size = 0x2000, scoped, tag = 'output window, operand 0']
    %8 = vsyncpa [#allocation4], 0
    %s9 = scalar_lea.sflag [#allocation4], 1
    %10 = vsyncpa %s9, 0
    %11 = vsyncpa [#allocation7], 0
    %12 = vsyncpa [#allocation5], 0
    %s13 = scalar_lea.sflag [#allocation5], 1
    %14 = vsyncpa %s13, 0
    loop: start=0, step=1, limit=4
    $region2: #{tpu_custom_call.1} parent=1 // loop_pre_header
      _
    $region3: #{tpu_custom_call.1} parent=1 // loop_header
      %s16 = sphi 0, %s20
      %p17 = scmp.ge.s32.totalorder %s16, 4
      %s23 = sphi 0, %s42
      %s24 = sphi 0, %s38
      %s25 = sphi 0, %s34
      %s26 = sphi 0, %s23
      %s27 = sphi 0, %s24
      %s28 = sphi 0, %s25
      %s29 = sphi 0, %s26
      %s30 = sphi 0, %s27
      %s31 = sphi 0, %s28
      %s47 = sphi 0, %s49
      %s50 = sphi 0, %s47
      %s51 = sphi 0, %s50
      %s67 = sphi 0, %s51
      %s75 = sphi 0, %s77
      %s78 = sphi 0, %s75
      %s79 = sphi 0, %s78
      %s95 = sphi 0, %s79
      %s101 = sphi 0, %s103
      %s104 = sphi 0, %s101
      %s105 = sphi 0, %s104
      %s121 = sphi 0, %s105
      %s129 = sphi 0, %s131
      %s132 = sphi 0, %s129
      %s133 = sphi 0, %s132
      %s149 = sphi 0, %s133
    $region4: #{tpu_custom_call.1} parent=1 // loop_header_branch
      %19 = sbr.rel (%p17) target = $region8
    $region5: #{tpu_custom_call.1} parent=1 // loop_body
      %s21 = ssub.s32 %s16, 1
      %s22 = ssub.s32 %s16, 2
      %s32 = sadd.s32 1, %s25
      %p33 = scmp.ge.s32.totalorder %s32, 1
      %s34 = scalar_select %p33, 0, %s32
      %s35 = sadd.s32 1, %s24
      %s36 = scalar_select %p33, %s35, %s24
      %p37 = scmp.ge.s32.totalorder %s36, 1
      %s38 = scalar_select %p37, 0, %s36
      %s39 = sadd.s32 1, %s23
      %s40 = scalar_select %p37, %s39, %s23
      %p41 = scmp.ge.s32.totalorder %s40, 2
      %s42 = scalar_select %p41, 0, %s40
      %s43 = ssub.s32 %s23, %s42
      %s44 = ssub.s32 %s25, %s34
      %s45 = sor.u32 %s43, %s44
      %p46 = scmp.eq.s32.totalorder %s45, 0
      %s48 = sadd.s32 %s47, 1
      %s49 = scalar_select %p46, %s47, %s48
      %p52 = pneg %p46
      %p53 = scmp.eq.s32.totalorder %s16, 1
      %p54 = por %p52, %p53
      %p55 = scmp.ne.s32.totalorder %s47, %s50
      %p56 = scmp.eq.s32.totalorder %s16, 0
      %p57 = por %p55, %p56
      %p58 = scmp.ne.s32.totalorder %s47, %s50
      %p59 = scmp.eq.s32.totalorder %s21, 1
      %p60 = por %p58, %p59
      %p61 = scmp.ne.s32.totalorder %s50, %s51
      %p62 = scmp.eq.s32.totalorder %s21, 0
      %p63 = por %p61, %p62
      %p64 = scmp.ne.s32.totalorder %s50, %s51
      %p65 = scmp.eq.s32.totalorder %s22, 1
      %p66 = por %p64, %p65
      %p68 = scmp.ne.s32.totalorder %s51, %s67
      %p69 = scmp.eq.s32.totalorder %s22, 0
      %p70 = por %p68, %p69
      %s71 = ssub.s32 %s24, %s38
      %s72 = ssub.s32 %s25, %s34
      %s73 = sor.u32 %s71, %s72
      %p74 = scmp.eq.s32.totalorder %s73, 0
      %s76 = sadd.s32 %s75, 1
      %s77 = scalar_select %p74, %s75, %s76
      %p80 = pneg %p74
      %p81 = scmp.eq.s32.totalorder %s16, 1
      %p82 = por %p80, %p81
      %p83 = scmp.ne.s32.totalorder %s75, %s78
      %p84 = scmp.eq.s32.totalorder %s16, 0
      %p85 = por %p83, %p84
      %p86 = scmp.ne.s32.totalorder %s75, %s78
      %p87 = scmp.eq.s32.totalorder %s21, 1
      %p88 = por %p86, %p87
      %p89 = scmp.ne.s32.totalorder %s78, %s79
      %p90 = scmp.eq.s32.totalorder %s21, 0
      %p91 = por %p89, %p90
      %p92 = scmp.ne.s32.totalorder %s78, %s79
      %p93 = scmp.eq.s32.totalorder %s22, 1
      %p94 = por %p92, %p93
      %p96 = scmp.ne.s32.totalorder %s79, %s95
      %p97 = scmp.eq.s32.totalorder %s22, 0
      %p98 = por %p96, %p97
      %s99 = ssub.s32 %s24, %s38
      %p100 = scmp.eq.s32.totalorder %s99, 0
      %s102 = sadd.s32 %s101, 1
      %s103 = scalar_select %p100, %s101, %s102
      %p106 = pneg %p100
      %p107 = scmp.eq.s32.totalorder %s16, 1
      %p108 = por %p106, %p107
      %p109 = scmp.ne.s32.totalorder %s101, %s104
      %p110 = scmp.eq.s32.totalorder %s16, 0
      %p111 = por %p109, %p110
      %p112 = scmp.ne.s32.totalorder %s101, %s104
      %p113 = scmp.eq.s32.totalorder %s21, 1
      %p114 = por %p112, %p113
      %p115 = scmp.ne.s32.totalorder %s104, %s105
      %p116 = scmp.eq.s32.totalorder %s21, 0
      %p117 = por %p115, %p116
      %p118 = scmp.ne.s32.totalorder %s104, %s105
      %p119 = scmp.eq.s32.totalorder %s22, 1
      %p120 = por %p118, %p119
      %p122 = scmp.ne.s32.totalorder %s105, %s121
      %p123 = scmp.eq.s32.totalorder %s22, 0
      %p124 = por %p122, %p123
      %s125 = ssub.s32 %s23, %s42
      %s126 = ssub.s32 %s24, %s38
      %s127 = sor.u32 %s125, %s126
      %p128 = scmp.eq.s32.totalorder %s127, 0
      %s130 = sadd.s32 %s129, 1
      %s131 = scalar_select %p128, %s129, %s130
      %p134 = pneg %p128
      %p135 = scmp.eq.s32.totalorder %s16, 1
      %p136 = por %p134, %p135
      %p137 = scmp.ne.s32.totalorder %s129, %s132
      %p138 = scmp.eq.s32.totalorder %s16, 0
      %p139 = por %p137, %p138
      %p140 = scmp.ne.s32.totalorder %s129, %s132
      %p141 = scmp.eq.s32.totalorder %s21, 1
      %p142 = por %p140, %p141
      %p143 = scmp.ne.s32.totalorder %s132, %s133
      %p144 = scmp.eq.s32.totalorder %s21, 0
      %p145 = por %p143, %p144
      %p146 = scmp.ne.s32.totalorder %s132, %s133
      %p147 = scmp.eq.s32.totalorder %s22, 1
      %p148 = por %p146, %p147
      %p150 = scmp.ne.s32.totalorder %s133, %s149
      %p151 = scmp.eq.s32.totalorder %s22, 0
      %p152 = por %p150, %p151
      %p153 = scmp.le.s32.totalorder 1, %s16
      %p154 = scmp.lt.s32.totalorder %s16, 3
      %p155 = pnand %p153, %p154
      %p156 = pneg %p155
      // Predicated region
      $region9: #{tpu_custom_call.1} parent=5 // pred_check
        _
      $region10: #{tpu_custom_call.1} parent=5 // pred_check_branch
        %158 = sbr.rel (%p155) target = $region12
      $region11: #{tpu_custom_call.1} parent=5 // pred_region
        %s159 = ssub.s32 %s16, 1
        // Predicated region
        $region13: #{tpu_custom_call.1} parent=11 // pred_check
          %p160 = pneg %p91
        $region14: #{tpu_custom_call.1} parent=11 // pred_check_branch
          %162 = sbr.rel (%p160) target = $region16
        $region15: #{tpu_custom_call.1} parent=11 // pred_region
          %s163 = smul.u32 16, %s27
          %s165 = ssub.s32 2048, 2048
          %166 = vsyncadd [#allocation7], %s165
          %s167 = sadd.s32 %s28, %s163
          %s168 = smul.addr %s167, 128
          %s169 = scalar_lea.hbm %s1, %s168
          %s170 = sshll.u32 [#allocation6], 4
          %s171 = int_to_ptr.vmem [resolvable:$true] %s170
          %176 = dma.hbm_to_vmem [thread:$0]  %s169, 2048, %s171, [#allocation7], 128, 128, 8
        $region16: #{tpu_custom_call.1} parent=11 // pred_fallthru
          _
        // Predicated region
        $region17: #{tpu_custom_call.1} parent=11 // pred_check
          %p177 = pneg %p117
        $region18: #{tpu_custom_call.1} parent=11 // pred_check_branch
          %179 = sbr.rel (%p177) target = $region20
        $region19: #{tpu_custom_call.1} parent=11 // pred_region
          %p180 = scmp.lt.s32.totalorder %s27, 0
          %s181 = scalar_select %p180, %s27, 0
          %s182 = scalar_lea.vmem %s2, %s181
        $region20: #{tpu_custom_call.1} parent=11 // pred_fallthru
          _
      $region12: #{tpu_custom_call.1} parent=5 // pred_fallthru
        _
      %p183 = scmp.lt.s32.totalorder %s16, 2
      // Predicated region
      $region21: #{tpu_custom_call.1} parent=5 // pred_check
        %p184 = pneg %p183
      $region22: #{tpu_custom_call.1} parent=5 // pred_check_branch
        %186 = sbr.rel (%p184) target = $region24
      $region23: #{tpu_custom_call.1} parent=5 // pred_region
        // Predicated region
        $region25: #{tpu_custom_call.1} parent=23 // pred_check
          %p187 = pneg %p57
        $region26: #{tpu_custom_call.1} parent=23 // pred_check_branch
          %189 = sbr.rel (%p187) target = $region28
        $region27: #{tpu_custom_call.1} parent=23 // pred_region
          %s190 = sand.u32 %s47, 1
          %s191 = scalar_lea.sflag [#allocation4], %s190
          %s192 = sand.u32 %s47, 1
          %s193 = smul.addr %s192, 8
          %s194 = scalar_lea.vmem [#allocation3], %s193
          %s196 = ssub.s32 128, 128
          %197 = vsyncadd %s191, %s196
          %s198 = sadd.s32 %s25, %s23
          %s199 = smul.addr %s198, 128
          %s200 = scalar_lea.hbm %s0, %s199
          %s202 = sshll.u32 %s194, 4
          %s203 = int_to_ptr.vmem [resolvable:$true] %s202
          %205 = dma.hbm_to_vmem [thread:$0]  %s200, 128, %s203, %s191
        $region28: #{tpu_custom_call.1} parent=23 // pred_fallthru
          _
      $region24: #{tpu_custom_call.1} parent=5 // pred_fallthru
        _
      %p206 = scmp.le.s32.totalorder 1, %s16
      %p207 = scmp.lt.s32.totalorder %s16, 3
      %p208 = pnand %p206, %p207
      %p209 = pneg %p208
      // Predicated region
      $region29: #{tpu_custom_call.1} parent=5 // pred_check
        _
      $region30: #{tpu_custom_call.1} parent=5 // pred_check_branch
        %211 = sbr.rel (%p208) target = $region32
      $region31: #{tpu_custom_call.1} parent=5 // pred_region
        %s212 = ssub.s32 %s16, 1
        %s213 = sand.u32 %s50, 1
        %s214 = scalar_lea.sflag [#allocation4], %s213
        %s215 = sand.u32 %s50, 1
        %s216 = smul.addr %s215, 8
        %s217 = scalar_lea.vmem [#allocation3], %s216
        // Predicated region
        $region33: #{tpu_custom_call.1} parent=31 // pred_check
          %p218 = pneg %p63
        $region34: #{tpu_custom_call.1} parent=31 // pred_check_branch
          %220 = sbr.rel (%p218) target = $region36
        $region35: #{tpu_custom_call.1} parent=31 // pred_region
          %221 = dma.done %s214, 128
        $region36: #{tpu_custom_call.1} parent=31 // pred_fallthru
          _
        // Predicated region
        $region37: #{tpu_custom_call.1} parent=31 // pred_check
          %p222 = pneg %p91
        $region38: #{tpu_custom_call.1} parent=31 // pred_check_branch
          %224 = sbr.rel (%p222) target = $region40
        $region39: #{tpu_custom_call.1} parent=31 // pred_region
          %225 = dma.done [#allocation7], 2048
        $region40: #{tpu_custom_call.1} parent=31 // pred_fallthru
          _
        %s226 = sand.u32 %s50, 1
        %s227 = scalar_lea.sflag [#allocation4], %s226
        %s228 = sand.u32 %s50, 1
        %s229 = smul.addr %s228, 8
        %s230 = scalar_lea.vmem [#allocation3], %s229
        %p231 = pneg %p63
        %p232 = pneg %p60
        %p233 = pneg %p91
        %p234 = pneg %p88
        %p235 = scmp.lt.s32.totalorder %s27, 0
        %s236 = scalar_select %p235, %s27, 0
        %s237 = scalar_lea.vmem %s2, %s236
        %p238 = pneg %p117
        %p239 = pneg %p114
        %p240 = pneg %p145
        %p241 = pneg %p142
        %s242 = sand.u32 %s132, 1
        %s243 = scalar_lea.sflag [#allocation5], %s242
        %s244 = sand.u32 %s132, 1
        %s245 = smul.addr %s244, 8
        %s246 = scalar_lea.vmem [#allocation8], %s245
        %s247 = smul.u32 16, %s27
        %p248 = scmp.lt.s32.totalorder %s27, 0
        %s249 = scalar_select %p248, %s27, 0
        %s250 = scalar_lea.vmem %s2, %s249
        %v252 = vld [vmem:[%s217] sm:$0xff]
        %v253 = vld [vmem:[#allocation6] sm:$0xff]
        %v254 = vld [vmem:[#allocation6 + $0x8] sm:$0xff]
        %v255 = vld [vmem:[#allocation6 + $0x10] sm:$0xff]
        %v256 = vld [vmem:[#allocation6 + $0x18] sm:$0xff]
        %v257 = vld [vmem:[#allocation6 + $0x20] sm:$0xff]
        %v258 = vld [vmem:[#allocation6 + $0x28] sm:$0xff]
        %v259 = vld [vmem:[#allocation6 + $0x30] sm:$0xff]
        %v260 = vld [vmem:[#allocation6 + $0x38] sm:$0xff]
        %v261 = vld [vmem:[#allocation6 + $0x40] sm:$0xff]
        %v262 = vld [vmem:[#allocation6 + $0x48] sm:$0xff]
        %v263 = vld [vmem:[#allocation6 + $0x50] sm:$0xff]
        %v264 = vld [vmem:[#allocation6 + $0x58] sm:$0xff]
        %v265 = vld [vmem:[#allocation6 + $0x60] sm:$0xff]
        %v266 = vld [vmem:[#allocation6 + $0x68] sm:$0xff]
        %v267 = vld [vmem:[#allocation6 + $0x70] sm:$0xff]
        %v268 = vld [vmem:[#allocation6 + $0x78] sm:$0xff]
        %v269 = vpack.c.bf16 %v252, %v252
        %v270 = vpack.c.bf16 %v254, %v253
        %v271 = vpack.c.bf16 %v256, %v255
        %v272 = vpack.c.bf16 %v258, %v257
        %v273 = vpack.c.bf16 %v260, %v259
        %v274 = vpack.c.bf16 %v262, %v261
        %v275 = vpack.c.bf16 %v264, %v263
        %v276 = vpack.c.bf16 %v266, %v265
        %v277 = vpack.c.bf16 %v268, %v267
        %278 = vmatprep.subr.bf16.mxu0 0
        %279 = vmatpush1.bf16.xpose.msra.mxu0 %v277
        %280 = vmatprep.subr.bf16.mxu0 0
        %281 = vmatpush1.bf16.xpose.msra.mxu0 %v276
        %282 = vmatprep.subr.bf16.mxu0 0
        %283 = vmatpush1.bf16.xpose.msra.mxu0 %v275
        %284 = vmatprep.subr.bf16.mxu0 0
        %285 = vmatpush1.bf16.xpose.msra.mxu0 %v274
        %286 = vmatprep.subr.bf16.mxu0 0
        %287 = vmatpush1.bf16.xpose.msra.mxu0 %v273
        %288 = vmatprep.subr.bf16.mxu0 0
        %289 = vmatpush1.bf16.xpose.msra.mxu0 %v272
        %290 = vmatprep.subr.bf16.mxu0 0
        %291 = vmatpush1.bf16.xpose.msra.mxu0 %v271
        %292 = vmatprep.subr.bf16.mxu0 0
        %293 = vmatpush1.bf16.xpose.msra.mxu0 %v270
        %294 = vmatprep.subr.bf16.mxu0 0
        %295 = vmatpush2.bf16.xpose.msra.mxu0 0
        %296 = vmatprep.subr.bf16.mxu0 0
        %297 = vmatpush2.bf16.xpose.msra.mxu0 0
        %298 = vmatprep.subr.bf16.mxu0 0
        %299 = vmatpush2.bf16.xpose.msra.mxu0 0
        %300 = vmatprep.subr.bf16.mxu0 0
        %301 = vmatpush2.bf16.xpose.msra.mxu0 0
        %302 = vmatprep.subr.bf16.mxu0 0
        %303 = vmatpush2.bf16.xpose.msra.mxu0 0
        %304 = vmatprep.subr.bf16.mxu0 0
        %305 = vmatpush2.bf16.xpose.msra.mxu0 0
        %306 = vmatprep.subr.bf16.mxu0 0
        %307 = vmatpush2.bf16.xpose.msra.mxu0 0
        %308 = vmatprep.subr.bf16.mxu0 0
        %309 = vmatpush2.bf16.xpose.msra.mxu0 0
        %310 = vmatprep.mubr.bf16.mxu0 0
        %311 = vmatmul.mubr.bf16.gmra.mxu0 %v269
        %v312 = vpop.f32.mrf.mxu0
        %v313 = vadd.f32 0.0, %v312
        %v314 = vpop.f32.mrf.mxu0
        %v315 = vpop.f32.mrf.mxu0
        %v316 = vpop.f32.mrf.mxu0
        %317 = vdwg.mxu0
        %p318 = scmp.eq.s32.totalorder %s28, 0
        // Predicated region
        $region41: #{tpu_custom_call.1} parent=31 // pred_check
          %p319 = pneg %p318
        $region42: #{tpu_custom_call.1} parent=31 // pred_check_branch
          %321 = sbr.rel (%p319) target = $region44
        $region43: #{tpu_custom_call.1} parent=31 // pred_region
          %322 = vst [vmem:[#allocation2] sm:$0xff] %v313
        $region44: #{tpu_custom_call.1} parent=31 // pred_fallthru
          _
        %p323 = scmp.gt.s32.totalorder %s28, 0
        // Predicated region
        $region45: #{tpu_custom_call.1} parent=31 // pred_check
          %p324 = pneg %p323
        $region46: #{tpu_custom_call.1} parent=31 // pred_check_branch
          %326 = sbr.rel (%p324) target = $region48
        $region47: #{tpu_custom_call.1} parent=31 // pred_region
          %v327 = vld [vmem:[#allocation2] sm:$0xff]
          %v328 = vadd.f32 %v327, %v313
          %329 = vst [vmem:[#allocation2] sm:$0xff] %v328
        $region48: #{tpu_custom_call.1} parent=31 // pred_fallthru
          _
        // Predicated region
        $region49: #{tpu_custom_call.1} parent=31 // pred_check
          %p330 = pneg %p318
        $region50: #{tpu_custom_call.1} parent=31 // pred_check_branch
          %332 = sbr.rel (%p330) target = $region52
        $region51: #{tpu_custom_call.1} parent=31 // pred_region
          %v333 = vld [vmem:[#allocation2] sm:$0xff]
          %v334 = vld [vmem:[%s250] sm:$0x1]
          %v336 = vlaneseq
          %v337 = vshrl.u32 %v336, 7
          %v338 = vsub.s32 0, %v337
          %v339 = vrot.slane %v334, %v338
          %v341 = vadd.f32 %v333, %v339
          %v342 = vmax.f32 %v341, 0.0
          %343 = vst [vmem:[%s246] sm:$0xff] %v342
        $region52: #{tpu_custom_call.1} parent=31 // pred_fallthru
          _
        %s344 = sand.u32 %s132, 1
        %s345 = scalar_lea.sflag [#allocation5], %s344
        %s346 = sand.u32 %s132, 1
        %s347 = smul.addr %s346, 8
        %s348 = scalar_lea.vmem [#allocation8], %s347
        // Predicated region
        $region53: #{tpu_custom_call.1} parent=31 // pred_check
          %p349 = pneg %p142
        $region54: #{tpu_custom_call.1} parent=31 // pred_check_branch
          %351 = sbr.rel (%p349) target = $region56
        $region55: #{tpu_custom_call.1} parent=31 // pred_region
          %s353 = ssub.s32 128, 128
          %354 = vsyncadd %s345, %s353
          %s355 = sadd.s32 %s27, %s26
          %s356 = smul.addr %s355, 128
          %s357 = scalar_lea.hbm %s3, %s356
          %s359 = sshll.u32 %s348, 4
          %s360 = int_to_ptr.vmem [resolvable:$true] %s359
          %362 = dma.vmem_to_hbm [thread:$0]  %s360, 128, %s357, %s345
        $region56: #{tpu_custom_call.1} parent=31 // pred_fallthru
          _
      $region32: #{tpu_custom_call.1} parent=5 // pred_fallthru
        _
      %p363 = scmp.le.s32.totalorder 2, %s16
      // Predicated region
      $region57: #{tpu_custom_call.1} parent=5 // pred_check
        %p364 = pneg %p363
      $region58: #{tpu_custom_call.1} parent=5 // pred_check_branch
        %366 = sbr.rel (%p364) target = $region60
      $region59: #{tpu_custom_call.1} parent=5 // pred_region
        %s367 = ssub.s32 %s16, 2
        // Predicated region
        $region61: #{tpu_custom_call.1} parent=59 // pred_check
          %p368 = pneg %p148
        $region62: #{tpu_custom_call.1} parent=59 // pred_check_branch
          %370 = sbr.rel (%p368) target = $region64
        $region63: #{tpu_custom_call.1} parent=59 // pred_region
          %s371 = sand.u32 %s133, 1
          %s372 = scalar_lea.sflag [#allocation5], %s371
          %s373 = sand.u32 %s133, 1
          %s374 = smul.addr %s373, 8
          %s375 = scalar_lea.vmem [#allocation8], %s374
          %376 = dma.done %s372, 128
        $region64: #{tpu_custom_call.1} parent=59 // pred_fallthru
          _
      $region60: #{tpu_custom_call.1} parent=5 // pred_fallthru
        _
    $region6: #{tpu_custom_call.1} parent=1 // loop_footer
      %s20 = sadd.s32 1, %s16
    $region7: #{tpu_custom_call.1} parent=1 // loop_footer_branch
      %15 = sbr.rel target = $region3
    $region8: #{tpu_custom_call.1} parent=1 // loop_exit
      _
    %377 = vsyncpa [#allocation4], 1
    %s378 = scalar_lea.sflag [#allocation4], 1
    %379 = vsyncpa %s378, 1
    %380 = vsyncpa [#allocation7], 1
    %381 = vsyncpa [#allocation5], 1
    %s382 = scalar_lea.sflag [#allocation5], 1
    %383 = vsyncpa %s382, 1

</llo_original>
